<compile_context>
chip_gen: v7x
topology: tpu7x:2x2x1
jax: 0.10.0
libtpu: 0.0.40
codegen_flags: <defaults>
</compile_context>

<pallas_src>
import jax
import jax.numpy as jnp
import numpy as np
from jax.experimental import pallas as pl
from jax.experimental.pallas import tpu as pltpu


def _score_kernel(u_ref, e_ref, wfeat_ref, scal_ref, out_ref):
    # u_ref, e_ref : (D, TN)  gathered user / event embeddings (pairs on lanes)
    # wfeat_ref    : (D, 1)   feature part of the Linear(D+1, 1) weight (VMEM)
    # scal_ref     : (2,)     SMEM scalars: [w_sim, bias]
    # out_ref      : (1, TN)  scores (lane-dense row)
    u = u_ref[...].astype(jnp.float32)
    e = e_ref[...].astype(jnp.float32)
    w = wfeat_ref[...].astype(jnp.float32)            # (D, 1) broadcasts on lanes

    eps2 = jnp.float32(1e-8) * jnp.float32(1e-8)
    dot = jnp.sum(u * e, axis=0, keepdims=True)       # (1, TN) sublane reduce
    un2 = jnp.maximum(jnp.sum(u * u, axis=0, keepdims=True), eps2)
    en2 = jnp.maximum(jnp.sum(e * e, axis=0, keepdims=True), eps2)
    # F.cosine_similarity: dot / (max(||u||,eps) * max(||e||,eps))
    #   == dot * rsqrt(max(||u||^2,eps^2) * max(||e||^2,eps^2))   (one EUP push)
    sim = dot * jax.lax.rsqrt(un2 * en2)

    # Linear([u, sim]) == sum(u * w_feat) + sim * w_sim + b
    feat = jnp.sum(u * w, axis=0, keepdims=True)      # (1, TN)
    out_ref[...] = feat + sim * scal_ref[0] + scal_ref[1]


def _pick_tile(n, tile_req):
    """Lane-aligned tile size + padded row count. Keeps grid >= 2 when possible."""
    n128 = pl.cdiv(n, 128) * 128
    tile_req = max(128, (int(tile_req) // 128) * 128)
    if n128 <= 128:
        return 128, 128
    # Cap the tile so the grid has at least 2 steps (v7x has 2 TensorCores and
    # dimension_semantics=("parallel",) only shards a grid of >= 2 steps).
    max_tile = max(128, ((n128 // 2) // 128) * 128)
    tile_n = min(tile_req, max_tile)
    n_pad = pl.cdiv(n128, tile_n) * tile_n
    return tile_n, n_pad


def compute_scores_pallas(user_embeddings, event_embeddings, user_idx, event_idx,
                          w, b, tile_n=8192):
    """Scores for gathered (user, event) pairs.

    user_embeddings: (U, D); event_embeddings: (E, D); user_idx/event_idx: (N,) int.
    w: (1, D+1), b: (1,). Returns (N,) float32 scores.
    """
    N = int(user_idx.shape[0])
    D = int(user_embeddings.shape[1])
    if N == 0:
        return jnp.zeros((0,), jnp.float32)

    tile_n, n_pad = _pick_tile(N, tile_n)

    if n_pad != N:
        # Pad the cheap 1-D index vectors (NOT the gathered data); padded rows
        # gather row 0 (in-bounds) and are sliced off at the end.
        pad = n_pad - N
        user_idx = jnp.pad(user_idx, (0, pad))
        event_idx = jnp.pad(event_idx, (0, pad))

    # Contiguous ROW gathers on the untransposed tables; transpose only the
    # gathered (n_pad, D) slab into the lane-dense (D, n_pad) kernel layout.
    u_t = jnp.take(user_embeddings, user_idx, axis=0).T   # (D, n_pad)
    e_t = jnp.take(event_embeddings, event_idx, axis=0).T  # (D, n_pad)

    w = jnp.asarray(w)
    b = jnp.asarray(b)
    w_feat = w[:, :D].reshape(D, 1).astype(jnp.float32)             # (D, 1)
    scal = jnp.stack([w[0, D], b[0]]).astype(jnp.float32)            # (2,) [w_sim, bias]

    out = pl.pallas_call(
        _score_kernel,
        out_shape=jax.ShapeDtypeStruct((1, n_pad), jnp.float32),
        grid_spec=pltpu.PrefetchScalarGridSpec(
            num_scalar_prefetch=0,
            grid=(n_pad // tile_n,),
            in_specs=[
                pl.BlockSpec((D, tile_n), lambda i: (0, i)),
                pl.BlockSpec((D, tile_n), lambda i: (0, i)),
                pl.BlockSpec((D, 1), lambda i: (0, 0)),
                pl.BlockSpec(memory_space=pltpu.MemorySpace.SMEM),
            ],
            out_specs=pl.BlockSpec((1, tile_n), lambda i: (0, i)),
        ),
        compiler_params=pltpu.CompilerParams(
            dimension_semantics=("parallel",),   # megacore-shardable row loop
            # Double-buffered (D, tile_n) operands are ~4 MiB at the default
            # tile; 32 MiB is above every generation's scoped default and well
            # under v7x's 64 MiB physical VMEM.
            vmem_limit_bytes=32 * 1024 * 1024,
        ),
    )(u_t, e_t, w_feat, scal)
    return out[0, :N]


def init_mlp_params(key, d_model):
    # nn.Linear(d_model + 1, 1): U(-1/sqrt(fan_in), 1/sqrt(fan_in))
    k1, k2 = jax.random.split(key)
    fan_in = d_model + 1
    bound = 1.0 / np.sqrt(fan_in)
    w = jax.random.uniform(k1, (1, fan_in), jnp.float32, -bound, bound)
    b = jax.random.uniform(k2, (1,), jnp.float32, -bound, bound)
    return w, b


def user_interaction_predictor_forward(user_embeddings, event_embeddings,
                                       positive_user_event_indices,
                                       negative_event_indices, w, b):
    # Single pallas_call for positives + negatives (halves launch/pipeline cost).
    n_pos = int(positive_user_event_indices["user"].shape[0])
    uidx = jnp.concatenate([positive_user_event_indices["user"],
                            negative_event_indices["user"]])
    eidx = jnp.concatenate([positive_user_event_indices["event"],
                            negative_event_indices["event"]])
    scores = compute_scores_pallas(user_embeddings, event_embeddings,
                                   uidx, eidx, w, b)
    return {
        "positive_scores": scores[:n_pos],
        "negative_scores": scores[n_pos:],
    }


def _reference_scores(user_embeddings, event_embeddings, uidx, eidx, w, b):
    u = user_embeddings[uidx]
    e = event_embeddings[eidx]
    eps = 1e-8
    un = np.maximum(np.linalg.norm(u, axis=1), eps)
    en = np.maximum(np.linalg.norm(e, axis=1), eps)
    sim = np.sum(u * e, axis=1) / (un * en)
    combined = np.concatenate([u, sim[:, None]], axis=1)
    return (combined @ np.asarray(w).T + np.asarray(b)).squeeze()


if __name__ == "__main__":
    d_model = 32          # transformer_d_model
    num_users = 10
    num_events = 20

    key = jax.random.PRNGKey(0)
    k_u, k_e, k_w, k_idx = jax.random.split(key, 4)

    user_embeddings = jax.random.normal(k_u, (num_users, d_model), jnp.float32)
    event_embeddings = jax.random.normal(k_e, (num_events, d_model), jnp.float32)
    w, b = init_mlp_params(k_w, d_model)
    ue = np.asarray(user_embeddings)
    ee = np.asarray(event_embeddings)

    # (n_pos, n_neg) cases: tiny single-tile batch and a padded multi-tile batch.
    for n_pos, n_neg in ((16, 16), (150, 150)):
        ki1, ki2, ki3, ki4, k_idx = jax.random.split(k_idx, 5)
        pos_idx = {
            "user": jax.random.randint(ki1, (n_pos,), 0, num_users),
            "event": jax.random.randint(ki2, (n_pos,), 0, num_events),
        }
        neg_idx = {
            "user": jax.random.randint(ki3, (n_neg,), 0, num_users),
            "event": jax.random.randint(ki4, (n_neg,), 0, num_events),
        }

        out = user_interaction_predictor_forward(
            user_embeddings, event_embeddings, pos_idx, neg_idx, w, b)
        out = jax.tree_util.tree_map(jax.block_until_ready, out)

        # verify against a pure-numpy reference of the PyTorch semantics
        ref_pos = _reference_scores(ue, ee, np.asarray(pos_idx["user"]),
                                    np.asarray(pos_idx["event"]), w, b)
        ref_neg = _reference_scores(ue, ee, np.asarray(neg_idx["user"]),
                                    np.asarray(neg_idx["event"]), w, b)
        np.testing.assert_allclose(np.asarray(out["positive_scores"]), ref_pos,
                                   rtol=1e-5, atol=1e-5)
        np.testing.assert_allclose(np.asarray(out["negative_scores"]), ref_neg,
                                   rtol=1e-5, atol=1e-5)

    print("KERNEL_OK")
</pallas_src>

<mosaic_0001>
module attributes {stable_mosaic.version = 11 : i64} {
  func.func @_score_kernel(%arg0: i32, %arg1: memref<32x128xf32, #tpu.memory_space<vmem>>, %arg2: memref<32x128xf32, #tpu.memory_space<vmem>>, %arg3: memref<32x1xf32, #tpu.memory_space<vmem>>, %arg4: memref<2xf32, #tpu.memory_space<smem>>, %arg5: memref<1x128xf32, #tpu.memory_space<vmem>>) attributes {dimension_semantics = [#tpu.dimension_semantics<parallel>], iteration_bounds = array<i64: 1>, scalar_prefetch = 0 : i64, scratch_operands = 0 : i64, tpu.core_type = #tpu.core_type<tc>, window_params = [{transform_indices = @transform_0, window_bounds = array<i64: 32, 128>}, {transform_indices = @transform_1, window_bounds = array<i64: 32, 128>}, {pipeline_mode = #tpu.pipeline_mode<synchronous>, transform_indices = @transform_2, window_bounds = array<i64: 32, 1>}, {transform_indices = @transform_3, window_bounds = array<i64: 2>}, {transform_indices = @transform_4, window_bounds = array<i64: 1, 128>}]} {
    %c0 = arith.constant 0 : index
    %c0_0 = arith.constant 0 : index
    %0 = vector.load %arg1[%c0, %c0_0] : memref<32x128xf32, #tpu.memory_space<vmem>>, vector<32x128xf32>
    %c0_1 = arith.constant 0 : index
    %c0_2 = arith.constant 0 : index
    %1 = vector.load %arg2[%c0_1, %c0_2] : memref<32x128xf32, #tpu.memory_space<vmem>>, vector<32x128xf32>
    %c0_3 = arith.constant 0 : index
    %c0_4 = arith.constant 0 : index
    %2 = vector.load %arg3[%c0_3, %c0_4] : memref<32x1xf32, #tpu.memory_space<vmem>>, vector<32x1xf32>
    %cst = arith.constant 9.99999993E-9 : f32
    %cst_5 = arith.constant 9.99999993E-9 : f32
    %3 = arith.mulf %cst, %cst_5 : f32
    %4 = arith.mulf %0, %1 : vector<32x128xf32>
    %cst_6 = arith.constant dense<0.000000e+00> : vector<128xf32>
    %5 = vector.multi_reduction <add>, %4, %cst_6 [0] : vector<32x128xf32> to vector<128xf32>
    %6 = vector.shape_cast %5 : vector<128xf32> to vector<1x128xf32>
    %7 = arith.mulf %0, %0 : vector<32x128xf32>
    %cst_7 = arith.constant dense<0.000000e+00> : vector<128xf32>
    %8 = vector.multi_reduction <add>, %7, %cst_7 [0] : vector<32x128xf32> to vector<128xf32>
    %9 = vector.shape_cast %8 : vector<128xf32> to vector<1x128xf32>
    %10 = vector.broadcast %3 : f32 to vector<1x128xf32>
    %11 = arith.maximumf %9, %10 : vector<1x128xf32>
    %12 = arith.mulf %1, %1 : vector<32x128xf32>
    %cst_8 = arith.constant dense<0.000000e+00> : vector<128xf32>
    %13 = vector.multi_reduction <add>, %12, %cst_8 [0] : vector<32x128xf32> to vector<128xf32>
    %14 = vector.shape_cast %13 : vector<128xf32> to vector<1x128xf32>
    %15 = vector.broadcast %3 : f32 to vector<1x128xf32>
    %16 = arith.maximumf %14, %15 : vector<1x128xf32>
    %17 = arith.mulf %11, %16 : vector<1x128xf32>
    %18 = math.rsqrt %17 : vector<1x128xf32>
    %19 = arith.mulf %6, %18 : vector<1x128xf32>
    %20 = vector.broadcast %2 : vector<32x1xf32> to vector<32x128xf32>
    %21 = arith.mulf %0, %20 : vector<32x128xf32>
    %cst_9 = arith.constant dense<0.000000e+00> : vector<128xf32>
    %22 = vector.multi_reduction <add>, %21, %cst_9 [0] : vector<32x128xf32> to vector<128xf32>
    %23 = vector.shape_cast %22 : vector<128xf32> to vector<1x128xf32>
    %c0_10 = arith.constant 0 : index
    %24 = memref.load %arg4[%c0_10] : memref<2xf32, #tpu.memory_space<smem>>
    %25 = vector.broadcast %24 : f32 to vector<1x128xf32>
    %26 = arith.mulf %19, %25 : vector<1x128xf32>
    %27 = arith.addf %23, %26 : vector<1x128xf32>
    %c1 = arith.constant 1 : index
    %28 = memref.load %arg4[%c1] : memref<2xf32, #tpu.memory_space<smem>>
    %29 = vector.broadcast %28 : f32 to vector<1x128xf32>
    %30 = arith.addf %27, %29 : vector<1x128xf32>
    %c0_11 = arith.constant 0 : index
    %c0_12 = arith.constant 0 : index
    %31 = vector.load %arg5[%c0_11, %c0_12] : memref<1x128xf32, #tpu.memory_space<vmem>>, vector<1x128xf32>
    tpu.vector_store %arg5[%c0_11, %c0_12], %30 {strides = array<i32>} : memref<1x128xf32, #tpu.memory_space<vmem>>, vector<1x128xf32>,
    return
  }
  func.func @transform_0(%arg0: i32) -> (i32, i32) {
    %c0_i32 = arith.constant 0 : i32
    %c0_i32_0 = arith.constant 0 : i32
    return %c0_i32, %arg0 : i32, i32
  }
  func.func @transform_1(%arg0: i32) -> (i32, i32) {
    %c0_i32 = arith.constant 0 : i32
    %c0_i32_0 = arith.constant 0 : i32
    return %c0_i32, %arg0 : i32, i32
  }
  func.func @transform_2(%arg0: i32) -> (i32, i32) {
    %c0_i32 = arith.constant 0 : i32
    %c0_i32_0 = arith.constant 0 : i32
    %c0_i32_1 = arith.constant 0 : i32
    return %c0_i32, %c0_i32_0 : i32, i32
  }
  func.func @transform_3(%arg0: i32) -> i32 {
    %c0_i32 = arith.constant 0 : i32
    %c0_i32_0 = arith.constant 0 : i32
    return %c0_i32 : i32
  }
  func.func @transform_4(%arg0: i32) -> (i32, i32) {
    %c0_i32 = arith.constant 0 : i32
    %c0_i32_0 = arith.constant 0 : i32
    return %c0_i32, %arg0 : i32, i32
  }
}

</mosaic_0001>

<llo_original>
// kernel: tpu_custom_call.1
$region0: #{tpu_custom_call.1}
  #allocation0 [shape = 'u32[]', space=smem, size = 0x4, offset = 0x4, fixed_abs, tag = 'smem constant byte address 0x4 - core index']
  #allocation1 [shape = 'u32[144,128]{1,0:T(1,128)}', space=vmem, size = 0x12000, scoped, tag = 'internal scratch']
  %s0 = inlined_call_operand.vmem [shape: f32[32,128], index: 0, kind: input, shape index: {}]
  %s1 = inlined_call_operand.hbm [shape: f32[32,128], index: 1, kind: input, shape index: {}]
  %s2 = inlined_call_operand.vmem [shape: f32[32,1], index: 2, kind: input, shape index: {}]
  %s3 = inlined_call_operand.vmem [shape: f32[2], index: 3, kind: input, shape index: {}]
  %s4 = inlined_call_operand.hbm [shape: f32[1,128], index: 4, kind: output, shape index: {}]
  %s5 = sld [smem:[#allocation0]]
  $region34: #{tpu_custom_call.1} parent=0
    _
  %s7 = ssub.s32 1, %s5
  %s8 = scalar_select 0, %s7, %s5
  $region1: #{tpu_custom_call.1} parent=0
    #allocation2 [shape = 'u8[16384]{0}', space=vmem, size = 0x4000, scoped, tag = 'input window, operand 1, single buffered']
    #allocation3 [shape = 's32[1]{0}', space=sflag, size = 0x4, scoped, tag = 'scoped memory for tpu_custom_call.1']
    #allocation4 [shape = 's32[1]{0}', space=sflag, size = 0x4, scoped, tag = 'scoped memory for tpu_custom_call.1']
    #allocation5 [shape = 's32[1]{0}', space=sflag, size = 0x4, scoped, tag = 'scoped memory for tpu_custom_call.1']
    #allocation6 [shape = 'u8[512]{0}', space=smem, size = 0x200, scoped, tag = 'input window, operand 3, single buffered']
    #allocation7 [shape = 'u8[512]{0}', space=vmem, size = 0x400, scoped, tag = 'output window, operand 0, single buffered']
    %9 = vsyncpa [#allocation3], 0
    %10 = vsyncpa [#allocation5], 0
    %11 = vsyncpa [#allocation4], 0
    // Predicated region
    $region2: #{tpu_custom_call.1} parent=1 // pred_check
      _
    $region3: #{tpu_custom_call.1} parent=1 // pred_check_branch
      %13 = sbr.rel (0) target = $region5
    $region4: #{tpu_custom_call.1} parent=1 // pred_region
      _
    $region5: #{tpu_custom_call.1} parent=1 // pred_fallthru
      _
    // Predicated region
    $region6: #{tpu_custom_call.1} parent=1 // pred_check
      _
    $region7: #{tpu_custom_call.1} parent=1 // pred_check_branch
      %15 = sbr.rel (0) target = $region9
    $region8: #{tpu_custom_call.1} parent=1 // pred_region
      %s17 = ssub.s32 512, 512
      %18 = vsyncadd [#allocation3], %s17
      %s19 = sshll.u32 [#allocation2], 4
      %s20 = int_to_ptr.vmem [resolvable:$true] %s19
      %25 = dma.hbm_to_vmem [thread:$0]  %s1, 512, %s20, [#allocation3], 128, 128, 8
    $region9: #{tpu_custom_call.1} parent=1 // pred_fallthru
      _
    // Predicated region
    $region10: #{tpu_custom_call.1} parent=1 // pred_check
      _
    $region11: #{tpu_custom_call.1} parent=1 // pred_check_branch
      %27 = sbr.rel (0) target = $region13
    $region12: #{tpu_custom_call.1} parent=1 // pred_region
      _
    $region13: #{tpu_custom_call.1} parent=1 // pred_fallthru
      _
    // Predicated region
    $region14: #{tpu_custom_call.1} parent=1 // pred_check
      _
    $region15: #{tpu_custom_call.1} parent=1 // pred_check_branch
      %29 = sbr.rel (0) target = $region17
    $region16: #{tpu_custom_call.1} parent=1 // pred_region
      %s31 = ssub.s32 16, 16
      %32 = vsyncadd [#allocation5], %s31
      %s34 = sshll.u32 %s3, 4
      %s35 = int_to_ptr.vmem [resolvable:$true] %s34
      %37 = dma.vmem_to_smem %s35, 16, [#allocation6], [#allocation5]
    $region17: #{tpu_custom_call.1} parent=1 // pred_fallthru
      _
    // Predicated region
    $region18: #{tpu_custom_call.1} parent=1 // pred_check
      _
    $region19: #{tpu_custom_call.1} parent=1 // pred_check_branch
      %39 = sbr.rel (0) target = $region21
    $region20: #{tpu_custom_call.1} parent=1 // pred_region
      %40 = dma.done [#allocation3], 512
    $region21: #{tpu_custom_call.1} parent=1 // pred_fallthru
      _
    // Predicated region
    $region22: #{tpu_custom_call.1} parent=1 // pred_check
      _
    $region23: #{tpu_custom_call.1} parent=1 // pred_check_branch
      %42 = sbr.rel (0) target = $region25
    $region24: #{tpu_custom_call.1} parent=1 // pred_region
      %43 = dma.done [#allocation5], 16
    $region25: #{tpu_custom_call.1} parent=1 // pred_fallthru
      _
    %44 = sfence
    %v45 = vld [vmem:[%s0] sm:$0xff]
    %v46 = vld [vmem:[%s0 + $0x8] sm:$0xff]
    %v47 = vld [vmem:[%s0 + $0x10] sm:$0xff]
    %v48 = vld [vmem:[%s0 + $0x18] sm:$0xff]
    %v49 = vld [vmem:[#allocation2] sm:$0xff]
    %v50 = vld [vmem:[#allocation2 + $0x8] sm:$0xff]
    %v51 = vld [vmem:[#allocation2 + $0x10] sm:$0xff]
    %v52 = vld [vmem:[#allocation2 + $0x18] sm:$0xff]
    %v53 = vld [vmem:[%s2] sm:$0xff]
    %v54 = vld [vmem:[%s2 + $0x8] sm:$0xff]
    %v55 = vld [vmem:[%s2 + $0x10] sm:$0xff]
    %v56 = vld [vmem:[%s2 + $0x18] sm:$0xff]
    %v57 = vmul.f32 %v45, %v49
    %v58 = vmul.f32 %v46, %v50
    %v59 = vmul.f32 %v47, %v51
    %v60 = vmul.f32 %v48, %v52
    %v61 = vadd.f32 %v57, %v58
    %v62 = vadd.f32 %v61, %v59
    %v63 = vadd.f32 %v62, %v60
    %v64 = vrot.slane %v63, 4
    %v65 = vadd.f32 %v63, %v64
    %v66 = vrot.slane %v65, 2
    %v67 = vadd.f32 %v65, %v66
    %v68 = vrot.slane %v67, 1
    %v69 = vadd.f32 %v67, %v68
    %v70 = vmul.f32 %v45, %v45
    %v71 = vmul.f32 %v46, %v46
    %v72 = vmul.f32 %v47, %v47
    %v73 = vmul.f32 %v48, %v48
    %v74 = vadd.f32 %v70, %v71
    %v75 = vadd.f32 %v74, %v72
    %v76 = vadd.f32 %v75, %v73
    %v77 = vrot.slane %v76, 4
    %v78 = vadd.f32 %v76, %v77
    %v79 = vrot.slane %v78, 2
    %v80 = vadd.f32 %v78, %v79
    %v81 = vrot.slane %v80, 1
    %v82 = vadd.f32 %v80, %v81
    %v83 = vmax.f32 %v82, 1e-16
    %v84 = vmul.f32 %v49, %v49
    %v85 = vmul.f32 %v50, %v50
    %v86 = vmul.f32 %v51, %v51
    %v87 = vmul.f32 %v52, %v52
    %v88 = vadd.f32 %v84, %v85
    %v89 = vadd.f32 %v88, %v86
    %v90 = vadd.f32 %v89, %v87
    %v91 = vrot.slane %v90, 4
    %v92 = vadd.f32 %v90, %v91
    %v93 = vrot.slane %v92, 2
    %v94 = vadd.f32 %v92, %v93
    %v95 = vrot.slane %v94, 1
    %v96 = vadd.f32 %v94, %v95
    %v97 = vmax.f32 %v96, 1e-16
    %v98 = vmul.f32 %v83, %v97
    %v99 = vrsqrt.pop %v98
    %v100 = vmul.f32 %v69, %v99
    %102 = vset.pattern.permute.xlu0 0
    %103 = vperm.xlu0 %102, %v53
    %v104 = vpop.permute.xlu0 %103
    %107 = vset.pattern.permute.xlu0 0
    %108 = vperm.xlu0 %107, %v54
    %v109 = vpop.permute.xlu0 %108
    %112 = vset.pattern.permute.xlu0 0
    %113 = vperm.xlu0 %112, %v55
    %v114 = vpop.permute.xlu0 %113
    %117 = vset.pattern.permute.xlu0 0
    %118 = vperm.xlu0 %117, %v56
    %v119 = vpop.permute.xlu0 %118
    %v121 = vmul.f32 %v45, %v104
    %v122 = vmul.f32 %v46, %v109
    %v123 = vmul.f32 %v47, %v114
    %v124 = vmul.f32 %v48, %v119
    %v125 = vadd.f32 %v121, %v122
    %v126 = vadd.f32 %v125, %v123
    %v127 = vadd.f32 %v126, %v124
    %v128 = vrot.slane %v127, 4
    %v129 = vadd.f32 %v127, %v128
    %v130 = vrot.slane %v129, 2
    %v131 = vadd.f32 %v129, %v130
    %v132 = vrot.slane %v131, 1
    %v133 = vadd.f32 %v131, %v132
    %s134 = sld [smem:[#allocation6]]
    %v135 = vstv %s134
    %v136 = vmul.f32 %v100, %v135
    %v137 = vadd.f32 %v133, %v136
    %s138 = sld [smem:[#allocation6 + $0x1]]
    %v139 = vstv %s138
    %v140 = vadd.f32 %v137, %v139
    %141 = vst [vmem:[#allocation7] sm:$0x1] %v140
    // Predicated region
    $region26: #{tpu_custom_call.1} parent=1 // pred_check
      _
    $region27: #{tpu_custom_call.1} parent=1 // pred_check_branch
      %143 = sbr.rel (0) target = $region29
    $region28: #{tpu_custom_call.1} parent=1 // pred_region
      %s145 = ssub.s32 16, 16
      %146 = vsyncadd [#allocation4], %s145
      %s148 = sshll.u32 [#allocation7], 4
      %s149 = int_to_ptr.vmem [resolvable:$true] %s148
      %151 = dma.vmem_to_hbm [thread:$0]  %s149, 16, %s4, [#allocation4]
    $region29: #{tpu_custom_call.1} parent=1 // pred_fallthru
      _
    // Predicated region
    $region30: #{tpu_custom_call.1} parent=1 // pred_check
      _
    $region31: #{tpu_custom_call.1} parent=1 // pred_check_branch
      %153 = sbr.rel (0) target = $region33
    $region32: #{tpu_custom_call.1} parent=1 // pred_region
      %154 = dma.done [#allocation4], 16
    $region33: #{tpu_custom_call.1} parent=1 // pred_fallthru
      _
    %155 = vsyncpa [#allocation3], 1
    %156 = vsyncpa [#allocation4], 1
    %157 = vsyncpa [#allocation5], 1

</llo_original>
